<compile_context>
chip_gen: v5e
topology: v5e:2x2
jax: 0.10.0
libtpu: 0.0.40
codegen_flags: <defaults>
</compile_context>

<pallas_src>
import math

import jax
import jax.numpy as jnp
from jax.experimental import pallas as pl
from jax.experimental.pallas import tpu as pltpu

# ---- module hyper-parameters (MHA(d_model=32, num_heads=4, lin_att=True)) ----
D_MODEL = 32
D_QK = 32                          # d_qk defaults to d_model
NUM_HEADS = 4
HEAD_DIM = D_QK // NUM_HEADS       # 8
V_DIM = D_MODEL // NUM_HEADS       # 8
B = 2
S = 8
BS = B * S
PROJ_W = 2 * D_QK + 2 * D_MODEL    # 128 lanes: [qk(64) | v(32) | ones(32)]


def _elu_plus_one(x):
    # F.elu(x) + 1  ==  x + 1 if x > 0 else exp(x)
    return jnp.where(x > 0, x + 1.0, jnp.exp(x))


def mha_kernel(x_ref, w_in_ref, b_in_ref, rep_mask_ref, rhs_mask_ref, keep_ref,
               wo_ref, bo_ref, o_ref):
    x = x_ref[...]                                            # (16, 32)

    # Fused, padded projection: one MXU push, result is exactly one vreg wide.
    # proj[:, 0:64]  = qk pre-activation
    # proj[:, 64:96] = v
    # proj[:, 96:128]= 1.0  (from zero weights + ones bias)
    proj = jnp.dot(x, w_in_ref[...], preferred_element_type=jnp.float32) + b_in_ref[...]

    qk = _elu_plus_one(proj[:, :2 * D_QK])                    # (16, 64) feature map
    q = qk[:, :D_QK]                                          # (16, 32) cols = (head, d)
    k = qk[:, D_QK:]                                          # (16, 32)
    v1 = proj[:, 2 * D_QK:]                                   # (16, 64) = [v | ones]

    # Head-block-diagonal expansion; masks are precomputed constants (no iota
    # / integer math in the kernel).
    k_rep = jnp.concatenate([k] * NUM_HEADS, axis=0) * rep_mask_ref[...]   # (64, 32)
    rhs = jnp.concatenate([v1] * NUM_HEADS, axis=0) * rhs_mask_ref[...]    # (64, 64) = [v_rep | rep_mask]

    # scores[i=(b,t), j=(h,b',s)] = q_h(b,t) . k_h(b',s); contract dim 1 of
    # both operands so no transposed copy of k_rep is materialized.
    scores = jax.lax.dot_general(
        q, k_rep, dimension_numbers=(((1,), (1,)), ((), ())),
        preferred_element_type=jnp.float32)                   # (16, 64)
    scores = scores * keep_ref[...]                           # causal & same-batch mask

    # Numerator and per-head denominator in a single MXU matmul.
    ctxd = jnp.dot(scores, rhs, preferred_element_type=jnp.float32)        # (16, 64)
    # denom > 0 always (elu+1 > 0 and the s == t term is always kept).
    ctx = ctxd[:, :D_MODEL] / ctxd[:, D_MODEL:]               # exact division (2 vregs)

    # Output projection, single slab store.
    y = jnp.dot(ctx, wo_ref[...], preferred_element_type=jnp.float32) + bo_ref[...]
    o_ref[...] = y.astype(o_ref.dtype)


def _constant_masks():
    """Trace-time constants (hoisted out of the kernel per perf review)."""
    # rep_mask[j, c] = 1 iff expanded-key row j = (h, r) and feature column
    # c = (h', d) belong to the same head (h == h').
    jr = jnp.arange(NUM_HEADS * BS)[:, None]
    cc = jnp.arange(D_QK)[None, :]
    rep_mask = (jr // BS == cc // HEAD_DIM).astype(jnp.float32)            # (64, 32)
    rhs_mask = jnp.concatenate([rep_mask, rep_mask], axis=1)               # (64, 64)

    # keep[i, j]: query row i = (b, t) may attend expanded-key row j = (h, b', s)
    # iff b' == b and s <= t (causal, same batch) -> cumsum formulation.
    ii = jnp.arange(BS)[:, None]
    jj = jnp.arange(NUM_HEADS * BS)[None, :]
    b_q, t_q = ii // S, ii % S
    r = jj % BS
    b_k, s_k = r // S, r % S
    keep = ((b_k == b_q) & (s_k <= t_q)).astype(jnp.float32)               # (16, 64)
    return rep_mask, rhs_mask, keep


@jax.jit
def mha_forward(x, w_in_ext, b_in_ext, wo_t, bo):
    Bb, Ss, dm = x.shape
    rows = Bb * Ss
    x2 = x.reshape(rows, dm)                       # contiguous -> free reshape at XLA level

    rep_mask, rhs_mask, keep = _constant_masks()   # folded to XLA constants
    b_in_b = jnp.broadcast_to(b_in_ext, (rows, PROJ_W))   # pre-broadcast biases
    bo_b = jnp.broadcast_to(bo, (rows, dm))

    vmem = pl.BlockSpec(memory_space=pltpu.MemorySpace.VMEM)   # whole-array, no grid/pipeline
    out2 = pl.pallas_call(
        mha_kernel,
        out_shape=jax.ShapeDtypeStruct((rows, dm), x.dtype),
        in_specs=[vmem] * 8,
        out_specs=vmem,
    )(x2, w_in_ext, b_in_b, rep_mask, rhs_mask, keep, wo_t, bo_b)
    return out2.reshape(Bb, Ss, dm)


def reference(x, Wqk, bqk, Wv, bv, Wo, bo):
    """Pure-JAX transliteration of the PyTorch module (cumsum formulation)."""
    qk = x @ Wqk.T + bqk
    v = x @ Wv.T + bv
    B_, S_, _ = x.shape
    qk = qk.reshape(B_, S_, 2, NUM_HEADS, HEAD_DIM)
    v = v.reshape(B_, S_, NUM_HEADS, V_DIM)
    q, k = qk[:, :, 0], qk[:, :, 1]
    q = jax.nn.elu(q) + 1.0
    k = jax.nn.elu(k) + 1.0
    kv = jnp.einsum('bshd,bsht->bshdt', k, v)
    kv = jnp.cumsum(kv, axis=1)
    kcum = jnp.cumsum(k, axis=1)
    n = 1.0 / jnp.einsum('bshd,bshd->bsh', q, kcum)
    out = jnp.einsum('bshd,bshdt->bsht', q, kv)
    out = n[..., None] * out
    ctx = out.reshape(B_, S_, D_MODEL)
    return ctx @ Wo.T + bo


def _linear_init(key, out_f, in_f):
    """PyTorch nn.Linear default init: U(-1/sqrt(in_f), 1/sqrt(in_f))."""
    kw, kb = jax.random.split(key)
    bound = 1.0 / math.sqrt(in_f)
    w = jax.random.uniform(kw, (out_f, in_f), jnp.float32, -bound, bound)
    b = jax.random.uniform(kb, (out_f,), jnp.float32, -bound, bound)
    return w, b


if __name__ == "__main__":
    key = jax.random.PRNGKey(0)
    kx, kqk, kv, ko = jax.random.split(key, 4)

    x = jax.random.normal(kx, (B, S, D_MODEL), jnp.float32)

    Wqk, bqk = _linear_init(kqk, 2 * D_QK, D_MODEL)   # (2*d_qk, d_model)
    Wv, bv = _linear_init(kv, D_MODEL, D_MODEL)
    Wo, bo = _linear_init(ko, D_MODEL, D_MODEL)

    # Host-side glue: fuse QK/V projections, pad with a zero block whose ones
    # bias provides the constant-1 columns used for the fused denominator RHS.
    w_in_ext = jnp.concatenate(
        [Wqk.T, Wv.T, jnp.zeros((D_MODEL, D_MODEL), jnp.float32)], axis=1)   # (32, 128)
    b_in_ext = jnp.concatenate(
        [bqk, bv, jnp.ones((D_MODEL,), jnp.float32)])[None, :]               # (1, 128)

    out = mha_forward(x, w_in_ext, b_in_ext, Wo.T, bo[None, :])
    out = jax.block_until_ready(out)

    ref = reference(x, Wqk, bqk, Wv, bv, Wo, bo)
    assert out.shape == (B, S, D_MODEL)
    if not jnp.allclose(out, ref, rtol=1e-4, atol=1e-4):
        raise AssertionError("Pallas MHA output mismatch vs reference")

    print("KERNEL_OK")
</pallas_src>

<mosaic_0001>
module attributes {stable_mosaic.version = 11 : i64} {
  func.func @mha_kernel(%arg0: memref<16x32xf32, #tpu.memory_space<vmem>>, %arg1: memref<32x128xf32, #tpu.memory_space<vmem>>, %arg2: memref<16x128xf32, #tpu.memory_space<vmem>>, %arg3: memref<64x32xf32, #tpu.memory_space<vmem>>, %arg4: memref<64x64xf32, #tpu.memory_space<vmem>>, %arg5: memref<16x64xf32, #tpu.memory_space<vmem>>, %arg6: memref<32x32xf32, #tpu.memory_space<vmem>>, %arg7: memref<16x32xf32, #tpu.memory_space<vmem>>, %arg8: memref<16x32xf32, #tpu.memory_space<vmem>>) attributes {dimension_semantics = [], scalar_prefetch = 0 : i64, scratch_operands = 0 : i64, tpu.core_type = #tpu.core_type<tc>} {
    %c0 = arith.constant 0 : index
    %c0_0 = arith.constant 0 : index
    %0 = vector.load %arg0[%c0, %c0_0] : memref<16x32xf32, #tpu.memory_space<vmem>>, vector<16x32xf32>
    %c0_1 = arith.constant 0 : index
    %c0_2 = arith.constant 0 : index
    %1 = vector.load %arg1[%c0_1, %c0_2] : memref<32x128xf32, #tpu.memory_space<vmem>>, vector<32x128xf32>
    %cst = arith.constant dense<0.000000e+00> : vector<16x128xf32>
    %2 = tpu.matmul %0, %1, %cst {dimension_numbers = #tpu.dot_dimension_numbers<[1], [0], [0], [1], [0, 0, 1, 1], [], []>} : vector<16x32xf32>, vector<32x128xf32>, vector<16x128xf32> -> vector<16x128xf32>
    %c0_3 = arith.constant 0 : index
    %c0_4 = arith.constant 0 : index
    %3 = vector.load %arg2[%c0_3, %c0_4] : memref<16x128xf32, #tpu.memory_space<vmem>>, vector<16x128xf32>
    %4 = arith.addf %2, %3 : vector<16x128xf32>
    %5 = vector.extract_strided_slice %4 {offsets = [0, 0], sizes = [16, 64], strides = [1, 1]} : vector<16x128xf32> to vector<16x64xf32>
    %cst_5 = arith.constant 0.000000e+00 : f32
    %6 = vector.broadcast %cst_5 : f32 to vector<16x64xf32>
    %7 = arith.cmpf ogt, %5, %6 : vector<16x64xf32>
    %cst_6 = arith.constant 1.000000e+00 : f32
    %8 = vector.broadcast %cst_6 : f32 to vector<16x64xf32>
    %9 = arith.addf %5, %8 : vector<16x64xf32>
    %10 = math.exp %5 : vector<16x64xf32>
    %11 = arith.select %7, %9, %10 : vector<16x64xi1>, vector<16x64xf32>
    %12 = vector.extract_strided_slice %11 {offsets = [0, 0], sizes = [16, 32], strides = [1, 1]} : vector<16x64xf32> to vector<16x32xf32>
    %13 = vector.extract_strided_slice %11 {offsets = [0, 32], sizes = [16, 32], strides = [1, 1]} : vector<16x64xf32> to vector<16x32xf32>
    %14 = vector.extract_strided_slice %4 {offsets = [0, 64], sizes = [16, 64], strides = [1, 1]} : vector<16x128xf32> to vector<16x64xf32>
    %15 = tpu.concatenate %13, %13, %13, %13 in 0 : vector<16x32xf32>, vector<16x32xf32>, vector<16x32xf32>, vector<16x32xf32> -> vector<64x32xf32>
    %c0_7 = arith.constant 0 : index
    %c0_8 = arith.constant 0 : index
    %16 = vector.load %arg3[%c0_7, %c0_8] : memref<64x32xf32, #tpu.memory_space<vmem>>, vector<64x32xf32>
    %17 = arith.mulf %15, %16 : vector<64x32xf32>
    %18 = tpu.concatenate %14, %14, %14, %14 in 0 : vector<16x64xf32>, vector<16x64xf32>, vector<16x64xf32>, vector<16x64xf32> -> vector<64x64xf32>
    %c0_9 = arith.constant 0 : index
    %c0_10 = arith.constant 0 : index
    %19 = vector.load %arg4[%c0_9, %c0_10] : memref<64x64xf32, #tpu.memory_space<vmem>>, vector<64x64xf32>
    %20 = arith.mulf %18, %19 : vector<64x64xf32>
    %cst_11 = arith.constant dense<0.000000e+00> : vector<16x64xf32>
    %21 = tpu.matmul %12, %17, %cst_11 {dimension_numbers = #tpu.dot_dimension_numbers<[1], [1], [0], [0], [0, 0, 1, 0], [], []>} : vector<16x32xf32>, vector<64x32xf32>, vector<16x64xf32> -> vector<16x64xf32>
    %c0_12 = arith.constant 0 : index
    %c0_13 = arith.constant 0 : index
    %22 = vector.load %arg5[%c0_12, %c0_13] : memref<16x64xf32, #tpu.memory_space<vmem>>, vector<16x64xf32>
    %23 = arith.mulf %21, %22 : vector<16x64xf32>
    %cst_14 = arith.constant dense<0.000000e+00> : vector<16x64xf32>
    %24 = tpu.matmul %23, %20, %cst_14 {dimension_numbers = #tpu.dot_dimension_numbers<[1], [0], [0], [1], [0, 0, 1, 1], [], []>} : vector<16x64xf32>, vector<64x64xf32>, vector<16x64xf32> -> vector<16x64xf32>
    %25 = vector.extract_strided_slice %24 {offsets = [0, 0], sizes = [16, 32], strides = [1, 1]} : vector<16x64xf32> to vector<16x32xf32>
    %26 = vector.extract_strided_slice %24 {offsets = [0, 32], sizes = [16, 32], strides = [1, 1]} : vector<16x64xf32> to vector<16x32xf32>
    %27 = arith.divf %25, %26 : vector<16x32xf32>
    %c0_15 = arith.constant 0 : index
    %c0_16 = arith.constant 0 : index
    %28 = vector.load %arg6[%c0_15, %c0_16] : memref<32x32xf32, #tpu.memory_space<vmem>>, vector<32x32xf32>
    %cst_17 = arith.constant dense<0.000000e+00> : vector<16x32xf32>
    %29 = tpu.matmul %27, %28, %cst_17 {dimension_numbers = #tpu.dot_dimension_numbers<[1], [0], [0], [1], [0, 0, 1, 1], [], []>} : vector<16x32xf32>, vector<32x32xf32>, vector<16x32xf32> -> vector<16x32xf32>
    %c0_18 = arith.constant 0 : index
    %c0_19 = arith.constant 0 : index
    %30 = vector.load %arg7[%c0_18, %c0_19] : memref<16x32xf32, #tpu.memory_space<vmem>>, vector<16x32xf32>
    %31 = arith.addf %29, %30 : vector<16x32xf32>
    %c0_20 = arith.constant 0 : index
    %c0_21 = arith.constant 0 : index
    %32 = vector.load %arg8[%c0_20, %c0_21] : memref<16x32xf32, #tpu.memory_space<vmem>>, vector<16x32xf32>
    tpu.vector_store %arg8[%c0_20, %c0_21], %31 {strides = array<i32>} : memref<16x32xf32, #tpu.memory_space<vmem>>, vector<16x32xf32>,
    return
  }
}

</mosaic_0001>

<llo_original>
// kernel: mha_forward.1
$region0: #{mha_forward.1}
  #allocation0 [shape = 'u32[]', space=smem, size = 0x4, offset = 0x4, fixed_abs, tag = 'smem constant byte address 0x4 - core index']
  #allocation1 [shape = 'u32[72,128]{1,0:T(1,128)}', space=vmem, size = 0x9000, scoped, tag = 'internal scratch']
  %s0 = inlined_call_operand.vmem [shape: f32[16,32], index: 0, kind: input, shape index: {}]
  %s1 = inlined_call_operand.vmem [shape: f32[32,128], index: 1, kind: input, shape index: {}]
  %s2 = inlined_call_operand.vmem [shape: f32[16,128], index: 2, kind: input, shape index: {}]
  %s3 = inlined_call_operand.vmem [shape: f32[64,32], index: 3, kind: input, shape index: {}]
  %s4 = inlined_call_operand.vmem [shape: f32[64,64], index: 4, kind: input, shape index: {}]
  %s5 = inlined_call_operand.vmem [shape: f32[16,64], index: 5, kind: input, shape index: {}]
  %s6 = inlined_call_operand.vmem [shape: f32[32,32], index: 6, kind: input, shape index: {}]
  %s7 = inlined_call_operand.vmem [shape: f32[16,32], index: 7, kind: input, shape index: {}]
  %s8 = inlined_call_operand.hbm [shape: f32[16,32], index: 8, kind: output, shape index: {}]
  %s9 = sld [smem:[#allocation0]]
  $region42: #{mha_forward.1} parent=0
    _
  %s11 = ssub.s32 1, %s9
  %s12 = scalar_select 0, %s11, %s9
  $region1: #{mha_forward.1} parent=0
    #allocation2 [shape = 'u8[8192]{0}', space=vmem, size = 0x2000, scoped, tag = 'output window, operand 0, single buffered']
    #allocation3 [shape = 's32[1]{0}', space=sflag, size = 0x4, scoped, tag = 'scoped memory for mha_forward.1']
    %13 = vsyncpa [#allocation3], 0
    // Predicated region
    $region2: #{mha_forward.1} parent=1 // pred_check
      _
    $region3: #{mha_forward.1} parent=1 // pred_check_branch
      %15 = sbr.rel (0) target = $region5
    $region4: #{mha_forward.1} parent=1 // pred_region
      _
    $region5: #{mha_forward.1} parent=1 // pred_fallthru
      _
    // Predicated region
    $region6: #{mha_forward.1} parent=1 // pred_check
      _
    $region7: #{mha_forward.1} parent=1 // pred_check_branch
      %17 = sbr.rel (0) target = $region9
    $region8: #{mha_forward.1} parent=1 // pred_region
      _
    $region9: #{mha_forward.1} parent=1 // pred_fallthru
      _
    // Predicated region
    $region10: #{mha_forward.1} parent=1 // pred_check
      _
    $region11: #{mha_forward.1} parent=1 // pred_check_branch
      %19 = sbr.rel (0) target = $region13
    $region12: #{mha_forward.1} parent=1 // pred_region
      _
    $region13: #{mha_forward.1} parent=1 // pred_fallthru
      _
    // Predicated region
    $region14: #{mha_forward.1} parent=1 // pred_check
      _
    $region15: #{mha_forward.1} parent=1 // pred_check_branch
      %21 = sbr.rel (0) target = $region17
    $region16: #{mha_forward.1} parent=1 // pred_region
      _
    $region17: #{mha_forward.1} parent=1 // pred_fallthru
      _
    // Predicated region
    $region18: #{mha_forward.1} parent=1 // pred_check
      _
    $region19: #{mha_forward.1} parent=1 // pred_check_branch
      %23 = sbr.rel (0) target = $region21
    $region20: #{mha_forward.1} parent=1 // pred_region
      _
    $region21: #{mha_forward.1} parent=1 // pred_fallthru
      _
    // Predicated region
    $region22: #{mha_forward.1} parent=1 // pred_check
      _
    $region23: #{mha_forward.1} parent=1 // pred_check_branch
      %25 = sbr.rel (0) target = $region25
    $region24: #{mha_forward.1} parent=1 // pred_region
      _
    $region25: #{mha_forward.1} parent=1 // pred_fallthru
      _
    // Predicated region
    $region26: #{mha_forward.1} parent=1 // pred_check
      _
    $region27: #{mha_forward.1} parent=1 // pred_check_branch
      %27 = sbr.rel (0) target = $region29
    $region28: #{mha_forward.1} parent=1 // pred_region
      _
    $region29: #{mha_forward.1} parent=1 // pred_fallthru
      _
    // Predicated region
    $region30: #{mha_forward.1} parent=1 // pred_check
      _
    $region31: #{mha_forward.1} parent=1 // pred_check_branch
      %29 = sbr.rel (0) target = $region33
    $region32: #{mha_forward.1} parent=1 // pred_region
      _
    $region33: #{mha_forward.1} parent=1 // pred_fallthru
      _
    %v30 = vld [vmem:[%s0] sm:$0xff]
    %v31 = vld [vmem:[%s0 + $0x8] sm:$0xff]
    %v32 = vld [vmem:[%s1] sm:$0xff]
    %v33 = vld [vmem:[%s1 + $0x8] sm:$0xff]
    %v34 = vld [vmem:[%s1 + $0x10] sm:$0xff]
    %v35 = vld [vmem:[%s1 + $0x18] sm:$0xff]
    %v36 = vld [vmem:[%s2] sm:$0xff]
    %v37 = vld [vmem:[%s2 + $0x8] sm:$0xff]
    %vm38 = vcmask 261120
    %v40 = vsel %vm38, %v30, 0
    %v43 = vsel %vm38, %v31, 0
    %45 = vmatpush.msra.mxu0 0.0
    %46 = vmatpush.msra.mxu0 0.0
    %47 = vmatpush.msra.mxu0 0.0
    %48 = vmatpush.msra.mxu0 0.0
    %49 = vmatpush.msra.mxu0 0.0
    %50 = vmatpush.msra.mxu0 0.0
    %51 = vmatpush.msra.mxu0 0.0
    %52 = vmatpush.msra.mxu0 0.0
    %53 = vmatpush.msra.mxu0 0.0
    %54 = vmatpush.msra.mxu0 0.0
    %55 = vmatpush.msra.mxu0 0.0
    %56 = vmatpush.msra.mxu0 0.0
    %57 = vmatpush.msra.mxu0 %v35
    %58 = vmatpush.msra.mxu0 %v34
    %59 = vmatpush.msra.mxu0 %v33
    %60 = vmatpush.msra.mxu0 %v32
    %61 = vmatmul.f32.gmra.mxu0 %v40
    %v62 = vpop.f32.mrf.mxu0
    %v63 = vadd.f32 %v36, %v62
    %64 = vmatmul.f32.gmra.mxu0 %v43
    %v65 = vpop.f32.mrf.mxu0
    %v66 = vadd.f32 %v37, %v65
    %67 = vdwg.mxu0
    %vm68 = vcmp.gt.f32.partialorder %v63, 0.0
    %vm69 = vcmp.gt.f32.partialorder %v66, 0.0
    %v70 = vadd.f32 %v63, 1.0
    %v71 = vadd.f32 %v66, 1.0
    %v72 = vmul.f32 %v63, 1.442695
    %v73 = vpow.pop %v72
    %v74 = vmul.f32 %v66, 1.442695
    %v75 = vpow.pop %v74
    %v76 = vsel %vm68, %v70, %v73
    %v77 = vsel %vm69, %v71, %v75
    %v78 = vld [vmem:[%s3] sm:$0xff]
    %v79 = vld [vmem:[%s3 + $0x8] sm:$0xff]
    %v80 = vld [vmem:[%s3 + $0x10] sm:$0xff]
    %v81 = vld [vmem:[%s3 + $0x18] sm:$0xff]
    %v82 = vld [vmem:[%s3 + $0x20] sm:$0xff]
    %v83 = vld [vmem:[%s3 + $0x28] sm:$0xff]
    %v84 = vld [vmem:[%s3 + $0x30] sm:$0xff]
    %v85 = vld [vmem:[%s3 + $0x38] sm:$0xff]
    %94 = vrot.lane.b32.xlu0 %v78, 32
    %v95 = vpop.permute.xlu0 %94
    %96 = vrot.lane.b32.xlu0 %v79, 32
    %v97 = vpop.permute.xlu0 %96
    %98 = vrot.lane.b32.xlu0 %v80, 32
    %v99 = vpop.permute.xlu0 %98
    %100 = vrot.lane.b32.xlu0 %v81, 32
    %v101 = vpop.permute.xlu0 %100
    %102 = vrot.lane.b32.xlu0 %v82, 32
    %v103 = vpop.permute.xlu0 %102
    %104 = vrot.lane.b32.xlu0 %v83, 32
    %v105 = vpop.permute.xlu0 %104
    %106 = vrot.lane.b32.xlu0 %v84, 32
    %v107 = vpop.permute.xlu0 %106
    %108 = vrot.lane.b32.xlu0 %v85, 32
    %v109 = vpop.permute.xlu0 %108
    %v118 = vmul.f32 %v76, %v95
    %v119 = vmul.f32 %v77, %v97
    %v120 = vmul.f32 %v76, %v99
    %v121 = vmul.f32 %v77, %v101
    %v122 = vmul.f32 %v76, %v103
    %v123 = vmul.f32 %v77, %v105
    %v124 = vmul.f32 %v76, %v107
    %v125 = vmul.f32 %v77, %v109
    %v126 = vld [vmem:[%s4] sm:$0xff]
    %v127 = vld [vmem:[%s4 + $0x8] sm:$0xff]
    %v128 = vld [vmem:[%s4 + $0x10] sm:$0xff]
    %v129 = vld [vmem:[%s4 + $0x18] sm:$0xff]
    %v130 = vld [vmem:[%s4 + $0x20] sm:$0xff]
    %v131 = vld [vmem:[%s4 + $0x28] sm:$0xff]
    %v132 = vld [vmem:[%s4 + $0x30] sm:$0xff]
    %v133 = vld [vmem:[%s4 + $0x38] sm:$0xff]
    %142 = vrot.lane.b32.xlu0 %v126, 64
    %v143 = vpop.permute.xlu0 %142
    %144 = vrot.lane.b32.xlu0 %v127, 64
    %v145 = vpop.permute.xlu0 %144
    %146 = vrot.lane.b32.xlu0 %v128, 64
    %v147 = vpop.permute.xlu0 %146
    %148 = vrot.lane.b32.xlu0 %v129, 64
    %v149 = vpop.permute.xlu0 %148
    %150 = vrot.lane.b32.xlu0 %v130, 64
    %v151 = vpop.permute.xlu0 %150
    %152 = vrot.lane.b32.xlu0 %v131, 64
    %v153 = vpop.permute.xlu0 %152
    %154 = vrot.lane.b32.xlu0 %v132, 64
    %v155 = vpop.permute.xlu0 %154
    %156 = vrot.lane.b32.xlu0 %v133, 64
    %v157 = vpop.permute.xlu0 %156
    %v166 = vmul.f32 %v63, %v143
    %v167 = vmul.f32 %v66, %v145
    %v168 = vmul.f32 %v63, %v147
    %v169 = vmul.f32 %v66, %v149
    %v170 = vmul.f32 %v63, %v151
    %v171 = vmul.f32 %v66, %v153
    %v172 = vmul.f32 %v63, %v155
    %v173 = vmul.f32 %v66, %v157
    %182 = vrot.lane.b32.xlu0 %v118, 96
    %v183 = vpop.permute.xlu0 %182
    %184 = vrot.lane.b32.xlu0 %v119, 96
    %v185 = vpop.permute.xlu0 %184
    %186 = vrot.lane.b32.xlu0 %v120, 96
    %v187 = vpop.permute.xlu0 %186
    %188 = vrot.lane.b32.xlu0 %v121, 96
    %v189 = vpop.permute.xlu0 %188
    %190 = vrot.lane.b32.xlu0 %v122, 96
    %v191 = vpop.permute.xlu0 %190
    %192 = vrot.lane.b32.xlu0 %v123, 96
    %v193 = vpop.permute.xlu0 %192
    %194 = vrot.lane.b32.xlu0 %v124, 96
    %v195 = vpop.permute.xlu0 %194
    %196 = vrot.lane.b32.xlu0 %v125, 96
    %v197 = vpop.permute.xlu0 %196
    %v199 = vsel %vm38, %v76, 0
    %v202 = vsel %vm38, %v77, 0
    %v204 = vsel %vm38, %v183, 0
    %v206 = vsel %vm38, %v185, 0
    %v208 = vsel %vm38, %v187, 0
    %v210 = vsel %vm38, %v189, 0
    %v212 = vsel %vm38, %v191, 0
    %v214 = vsel %vm38, %v193, 0
    %v216 = vsel %vm38, %v195, 0
    %v218 = vsel %vm38, %v197, 0
    %220 = vmatpush.xpose.msra.mxu0 0.0
    %221 = vmatpush.xpose.msra.mxu0 0.0
    %222 = vmatpush.xpose.msra.mxu0 0.0
    %223 = vmatpush.xpose.msra.mxu0 0.0
    %224 = vmatpush.xpose.msra.mxu0 0.0
    %225 = vmatpush.xpose.msra.mxu0 0.0
    %226 = vmatpush.xpose.msra.mxu0 0.0
    %227 = vmatpush.xpose.msra.mxu0 0.0
    %228 = vmatpush.xpose.msra.mxu0 %v218
    %229 = vmatpush.xpose.msra.mxu0 %v216
    %230 = vmatpush.xpose.msra.mxu0 %v214
    %231 = vmatpush.xpose.msra.mxu0 %v212
    %232 = vmatpush.xpose.msra.mxu0 %v210
    %233 = vmatpush.xpose.msra.mxu0 %v208
    %234 = vmatpush.xpose.msra.mxu0 %v206
    %235 = vmatpush.xpose.msra.mxu0 %v204
    %236 = vmatmul.f32.gmra.mxu0 %v199
    %v237 = vpop.f32.mrf.mxu0
    %v238 = vadd.f32 0.0, %v237
    %239 = vmatmul.f32.gmra.mxu0 %v202
    %v240 = vpop.f32.mrf.mxu0
    %v241 = vadd.f32 0.0, %v240
    %242 = vdwg.mxu0
    %v243 = vld [vmem:[%s5] sm:$0xff]
    %v244 = vld [vmem:[%s5 + $0x8] sm:$0xff]
    %v245 = vmul.f32 %v238, %v243
    %v246 = vmul.f32 %v241, %v244
    %255 = vrot.lane.b32.xlu0 %v166, 64
    %v256 = vpop.permute.xlu0 %255
    %257 = vrot.lane.b32.xlu0 %v167, 64
    %v258 = vpop.permute.xlu0 %257
    %259 = vrot.lane.b32.xlu0 %v168, 64
    %v260 = vpop.permute.xlu0 %259
    %261 = vrot.lane.b32.xlu0 %v169, 64
    %v262 = vpop.permute.xlu0 %261
    %263 = vrot.lane.b32.xlu0 %v170, 64
    %v264 = vpop.permute.xlu0 %263
    %265 = vrot.lane.b32.xlu0 %v171, 64
    %v266 = vpop.permute.xlu0 %265
    %267 = vrot.lane.b32.xlu0 %v172, 64
    %v268 = vpop.permute.xlu0 %267
    %269 = vrot.lane.b32.xlu0 %v173, 64
    %v270 = vpop.permute.xlu0 %269
    %vm279 = vcmask 523264
    %v281 = vsel %vm279, %v245, 0
    %v284 = vsel %vm279, %v246, 0
    %286 = vmatpush.msra.mxu0 0.0
    %287 = vmatpush.msra.mxu0 0.0
    %288 = vmatpush.msra.mxu0 0.0
    %289 = vmatpush.msra.mxu0 0.0
    %290 = vmatpush.msra.mxu0 0.0
    %291 = vmatpush.msra.mxu0 0.0
    %292 = vmatpush.msra.mxu0 0.0
    %293 = vmatpush.msra.mxu0 0.0
    %294 = vmatpush.msra.mxu0 %v270
    %295 = vmatpush.msra.mxu0 %v268
    %296 = vmatpush.msra.mxu0 %v266
    %297 = vmatpush.msra.mxu0 %v264
    %298 = vmatpush.msra.mxu0 %v262
    %299 = vmatpush.msra.mxu0 %v260
    %300 = vmatpush.msra.mxu0 %v258
    %301 = vmatpush.msra.mxu0 %v256
    %302 = vmatmul.f32.gmra.mxu0 %v281
    %v303 = vpop.f32.mrf.mxu0
    %v304 = vadd.f32 0.0, %v303
    %305 = vmatmul.f32.gmra.mxu0 %v284
    %v306 = vpop.f32.mrf.mxu0
    %v307 = vadd.f32 0.0, %v306
    %308 = vdwg.mxu0
    %311 = vrot.lane.b32.xlu0 %v304, 96
    %v312 = vpop.permute.xlu0 %311
    %313 = vrot.lane.b32.xlu0 %v307, 96
    %v314 = vpop.permute.xlu0 %313
    %v317 = vrcp.pop %v312
    %v318 = vmul.f32 %v312, %v317
    %v319 = vsub.f32 1.0, %v318
    %v320 = vmul.f32 %v317, %v319
    %v321 = vadd.f32 %v317, %v320
    %vm322 = vweird.f32 %v312
    %vm323 = vweird.f32 %v317
    %vm324 = vmor %vm322, %vm323
    %v325 = vsel %vm324, %v317, %v321
    %v326 = vand.u32 2147483647, %v312
    %vm327 = vcmp.eq.f32.partialorder %v326, 8.507059e+37
    %v328 = vand.u32 %v312, 2147483648
    %v329 = vor.u32 1.1754944e-38, %v328
    %v330 = vsel %vm327, %v329, %v325
    %v331 = vmul.f32 %v304, %v330
    %v332 = vrcp.pop %v314
    %v333 = vmul.f32 %v314, %v332
    %v334 = vsub.f32 1.0, %v333
    %v335 = vmul.f32 %v332, %v334
    %v336 = vadd.f32 %v332, %v335
    %vm337 = vweird.f32 %v314
    %vm338 = vweird.f32 %v332
    %vm339 = vmor %vm337, %vm338
    %v340 = vsel %vm339, %v332, %v336
    %v341 = vand.u32 2147483647, %v314
    %vm342 = vcmp.eq.f32.partialorder %v341, 8.507059e+37
    %v343 = vand.u32 %v314, 2147483648
    %v344 = vor.u32 1.1754944e-38, %v343
    %v345 = vsel %vm342, %v344, %v340
    %v346 = vmul.f32 %v307, %v345
    %v347 = vld [vmem:[%s6] sm:$0xff]
    %v348 = vld [vmem:[%s6 + $0x8] sm:$0xff]
    %v349 = vld [vmem:[%s6 + $0x10] sm:$0xff]
    %v350 = vld [vmem:[%s6 + $0x18] sm:$0xff]
    %v351 = vld [vmem:[%s7] sm:$0xff]
    %v352 = vld [vmem:[%s7 + $0x8] sm:$0xff]
    %v354 = vsel %vm38, %v331, 0
    %v357 = vsel %vm38, %v346, 0
    %359 = vmatpush.msra.mxu0 0.0
    %360 = vmatpush.msra.mxu0 0.0
    %361 = vmatpush.msra.mxu0 0.0
    %362 = vmatpush.msra.mxu0 0.0
    %363 = vmatpush.msra.mxu0 0.0
    %364 = vmatpush.msra.mxu0 0.0
    %365 = vmatpush.msra.mxu0 0.0
    %366 = vmatpush.msra.mxu0 0.0
    %367 = vmatpush.msra.mxu0 0.0
    %368 = vmatpush.msra.mxu0 0.0
    %369 = vmatpush.msra.mxu0 0.0
    %370 = vmatpush.msra.mxu0 0.0
    %371 = vmatpush.msra.mxu0 %v350
    %372 = vmatpush.msra.mxu0 %v349
    %373 = vmatpush.msra.mxu0 %v348
    %374 = vmatpush.msra.mxu0 %v347
    %375 = vmatmul.f32.gmra.mxu0 %v354
    %v376 = vpop.f32.mrf.mxu0
    %v377 = vadd.f32 %v351, %v376
    %378 = vmatmul.f32.gmra.mxu0 %v357
    %v379 = vpop.f32.mrf.mxu0
    %v380 = vadd.f32 %v352, %v379
    %381 = vdwg.mxu0
    %382 = vst.msk [vmem:[#allocation2] sm:$0xff] %vm38, %v377
    %383 = vst.msk [vmem:[#allocation2 + $0x8] sm:$0xff] %vm38, %v380
    // Predicated region
    $region34: #{mha_forward.1} parent=1 // pred_check
      _
    $region35: #{mha_forward.1} parent=1 // pred_check_branch
      %385 = sbr.rel (0) target = $region37
    $region36: #{mha_forward.1} parent=1 // pred_region
      %387 = vsyncadd [#allocation3], 0
      %s388 = sshll.u32 [#allocation2], 4
      %s389 = int_to_ptr.vmem [resolvable:$true] %s388
      %s390 = sshll.u32 %s8, 4
      %s391 = int_to_ptr.hbm [resolvable:$true] %s390
      %396 = dma.vmem_to_hbm [thread:$0]  %s389, 256, %s391, [#allocation3], 128, 128, 8
    $region37: #{mha_forward.1} parent=1 // pred_fallthru
      _
    // Predicated region
    $region38: #{mha_forward.1} parent=1 // pred_check
      _
    $region39: #{mha_forward.1} parent=1 // pred_check_branch
      %398 = sbr.rel (0) target = $region41
    $region40: #{mha_forward.1} parent=1 // pred_region
      %400 = dma.done [#allocation3], 256
    $region41: #{mha_forward.1} parent=1 // pred_fallthru
      _
    %401 = vsyncpa [#allocation3], 1

</llo_original>
